<compile_context>
chip_gen: v7x
topology: tpu7x:2x2x1
jax: 0.10.0
libtpu: 0.0.40
codegen_flags: <defaults>
</compile_context>

<pallas_src>
import jax
import jax.numpy as jnp
from jax.experimental import pallas as pl
from jax.experimental.pallas import tpu as pltpu


def _round_up(a, b):
    return (a + b - 1) // b * b


# ----------------------------------------------------------------------------
# Kernel: out = (x / ||x||_row) * scale + bias   (single fused pass)
# ----------------------------------------------------------------------------
def _l2norm_scale_bias_kernel(x_ref, sb_ref, o_ref):
    x = x_ref[...]                                   # (tm, D) activation tile
    ss = jnp.sum(x * x, axis=-1, keepdims=True)      # per-row reduce (XLU)
    inv = jax.lax.rsqrt(ss)                          # EUP rsqrt: x/sqrt(s) == x*rsqrt(s)
    scale = sb_ref[0:1, :]                           # (1, D) broadcast over rows
    bias = sb_ref[1:2, :]
    o_ref[...] = ((x * inv) * scale + bias).astype(o_ref.dtype)


def _target_block_bytes():
    """Per-(tm, D) block budget by TPU generation (HBM-bound streaming kernel)."""
    try:
        kind = jax.devices()[0].device_kind.lower()
    except Exception:
        kind = ""
    if "v5" in kind:
        return 3 << 20    # ~4 double-buffers -> ~12 MiB, inside v5e's 16 MiB scoped default
    return 6 << 20        # v6e / v7x: ~24 MiB of buffers; limit raised explicitly below


def customized_layer(x, scale, bias):
    """x: (M, D); scale, bias: (D,).  Matches CustomizedLayer.forward exactly."""
    M, D = x.shape
    itemsize = jnp.dtype(x.dtype).itemsize

    # Row tile: multiple of 8 sublanes, sized from the per-block byte budget; the
    # feature dim is kept whole and lane-dense (no K/N tiling, no masked partial
    # stores when D % 128 == 0).  Partial last row-block is handled by Pallas.
    row_bytes = _round_up(D, 128) * itemsize         # VMEM footprint of one row
    tm = max(8, (_target_block_bytes() // row_bytes) // 8 * 8)
    tm = min(tm, _round_up(M, 8))
    # For large inputs keep >= ~8 grid steps so the single "parallel" axis shards
    # across both TensorCores on v7x and per-step overhead stays amortized.
    if M * row_bytes >= (8 << 20):
        tm = min(tm, max(8, _round_up(pl.cdiv(M, 8), 8)))

    # Fused broadcast operand: row 0 = scale, row 1 = bias.
    sb = jnp.stack([scale, bias], axis=0)            # (2, D)

    return pl.pallas_call(
        _l2norm_scale_bias_kernel,
        out_shape=jax.ShapeDtypeStruct((M, D), x.dtype),
        grid=(pl.cdiv(M, tm),),
        in_specs=[
            pl.BlockSpec((tm, D), lambda i: (i, 0)),   # activation rows (full-D block)
            pl.BlockSpec((2, D), lambda i: (0, 0)),    # fused scale/bias (broadcast)
        ],
        out_specs=pl.BlockSpec((tm, D), lambda i: (i, 0)),
        compiler_params=pltpu.CompilerParams(
            dimension_semantics=("parallel",),
            vmem_limit_bytes=32 << 20,
        ),
    )(x, sb)


# ----------------------------------------------------------------------------
if __name__ == "__main__":
    key = jax.random.PRNGKey(0)
    kx, ks, kb = jax.random.split(key, 3)

    # Small shapes implied by the module: a batch of feature vectors of size in_dim.
    M, D = 16, 256
    x = jax.random.normal(kx, (M, D), jnp.float32)
    scale = jax.random.normal(ks, (D,), jnp.float32)
    bias = jax.random.normal(kb, (D,), jnp.float32)

    out = jax.block_until_ready(jax.jit(customized_layer)(x, scale, bias))

    # Pure-JAX reference (mirrors the PyTorch forward exactly).
    norm = jnp.sqrt(jnp.sum(x * x, axis=1, keepdims=True))
    ref = (x / norm) * scale + bias
    assert out.shape == (M, D), out.shape
    assert jnp.allclose(out, ref, atol=1e-5, rtol=1e-5), float(jnp.max(jnp.abs(out - ref)))

    # Also exercise the masked partial-last-block path (M not a multiple of 8/tm).
    M2 = 19
    x2 = jax.random.normal(kx, (M2, D), jnp.float32)
    out2 = jax.block_until_ready(jax.jit(customized_layer)(x2, scale, bias))
    norm2 = jnp.sqrt(jnp.sum(x2 * x2, axis=1, keepdims=True))
    ref2 = (x2 / norm2) * scale + bias
    assert out2.shape == (M2, D), out2.shape
    assert jnp.allclose(out2, ref2, atol=1e-5, rtol=1e-5), float(jnp.max(jnp.abs(out2 - ref2)))

    print("KERNEL_OK")
</pallas_src>

<mosaic_0001>
module attributes {stable_mosaic.version = 11 : i64} {
  func.func @_l2norm_scale_bias_kernel(%arg0: i32, %arg1: memref<16x256xf32, #tpu.memory_space<vmem>>, %arg2: memref<2x256xf32, #tpu.memory_space<vmem>>, %arg3: memref<16x256xf32, #tpu.memory_space<vmem>>) attributes {dimension_semantics = [#tpu.dimension_semantics<parallel>], iteration_bounds = array<i64: 1>, scalar_prefetch = 0 : i64, scratch_operands = 0 : i64, tpu.core_type = #tpu.core_type<tc>, window_params = [{transform_indices = @transform_0, window_bounds = array<i64: 16, 256>}, {pipeline_mode = #tpu.pipeline_mode<synchronous>, transform_indices = @transform_1, window_bounds = array<i64: 2, 256>}, {transform_indices = @transform_2, window_bounds = array<i64: 16, 256>}]} {
    %c0 = arith.constant 0 : index
    %c0_0 = arith.constant 0 : index
    %0 = vector.load %arg1[%c0, %c0_0] : memref<16x256xf32, #tpu.memory_space<vmem>>, vector<16x256xf32>
    %1 = arith.mulf %0, %0 : vector<16x256xf32>
    %cst = arith.constant dense<0.000000e+00> : vector<16xf32>
    %2 = vector.multi_reduction <add>, %1, %cst [1] : vector<16x256xf32> to vector<16xf32>
    %3 = vector.shape_cast %2 : vector<16xf32> to vector<16x1xf32>
    %4 = math.rsqrt %3 : vector<16x1xf32>
    %c0_1 = arith.constant 0 : index
    %c0_2 = arith.constant 0 : index
    %5 = vector.load %arg2[%c0_1, %c0_2] : memref<2x256xf32, #tpu.memory_space<vmem>>, vector<1x256xf32>
    %c1 = arith.constant 1 : index
    %c0_3 = arith.constant 0 : index
    %6 = vector.load %arg2[%c1, %c0_3] : memref<2x256xf32, #tpu.memory_space<vmem>>, vector<1x256xf32>
    %7 = vector.broadcast %4 : vector<16x1xf32> to vector<16x256xf32>
    %8 = arith.mulf %0, %7 : vector<16x256xf32>
    %9 = vector.broadcast %5 : vector<1x256xf32> to vector<16x256xf32>
    %10 = arith.mulf %8, %9 : vector<16x256xf32>
    %11 = vector.broadcast %6 : vector<1x256xf32> to vector<16x256xf32>
    %12 = arith.addf %10, %11 : vector<16x256xf32>
    %c0_4 = arith.constant 0 : index
    %c0_5 = arith.constant 0 : index
    %13 = vector.load %arg3[%c0_4, %c0_5] : memref<16x256xf32, #tpu.memory_space<vmem>>, vector<16x256xf32>
    tpu.vector_store %arg3[%c0_4, %c0_5], %12 {strides = array<i32>} : memref<16x256xf32, #tpu.memory_space<vmem>>, vector<16x256xf32>,
    return
  }
  func.func @transform_0(%arg0: i32) -> (i32, i32) {
    %c0_i32 = arith.constant 0 : i32
    %c0_i32_0 = arith.constant 0 : i32
    return %arg0, %c0_i32 : i32, i32
  }
  func.func @transform_1(%arg0: i32) -> (i32, i32) {
    %c0_i32 = arith.constant 0 : i32
    %c0_i32_0 = arith.constant 0 : i32
    %c0_i32_1 = arith.constant 0 : i32
    return %c0_i32, %c0_i32_0 : i32, i32
  }
  func.func @transform_2(%arg0: i32) -> (i32, i32) {
    %c0_i32 = arith.constant 0 : i32
    %c0_i32_0 = arith.constant 0 : i32
    return %arg0, %c0_i32 : i32, i32
  }
}

</mosaic_0001>

<llo_original>
// kernel: customized_layer.1
$region0: #{customized_layer.1}
  #allocation0 [shape = 'u32[]', space=smem, size = 0x4, offset = 0x4, fixed_abs, tag = 'smem constant byte address 0x4 - core index']
  #allocation1 [shape = 'u32[144,128]{1,0:T(1,128)}', space=vmem, size = 0x12000, scoped, tag = 'internal scratch']
  %s0 = inlined_call_operand.hbm [shape: f32[16,256], index: 0, kind: input, shape index: {}]
  %s1 = inlined_call_operand.vmem [shape: f32[2,256], index: 1, kind: input, shape index: {}]
  %s2 = inlined_call_operand.hbm [shape: f32[16,256], index: 2, kind: output, shape index: {}]
  %s3 = sld [smem:[#allocation0]]
  $region22: #{customized_layer.1} parent=0
    _
  %s5 = ssub.s32 1, %s3
  %s6 = scalar_select 0, %s5, %s3
  $region1: #{customized_layer.1} parent=0
    #allocation2 [shape = 'u8[16384]{0}', space=vmem, size = 0x4000, scoped, tag = 'input window, operand 0, single buffered']
    #allocation3 [shape = 's32[1]{0}', space=sflag, size = 0x4, scoped, tag = 'scoped memory for customized_layer.1']
    #allocation4 [shape = 's32[1]{0}', space=sflag, size = 0x4, scoped, tag = 'scoped memory for customized_layer.1']
    #allocation5 [shape = 'u8[16384]{0}', space=vmem, size = 0x4000, scoped, tag = 'output window, operand 0, single buffered']
    %7 = vsyncpa [#allocation3], 0
    %8 = vsyncpa [#allocation4], 0
    // Predicated region
    $region2: #{customized_layer.1} parent=1 // pred_check
      _
    $region3: #{customized_layer.1} parent=1 // pred_check_branch
      %10 = sbr.rel (0) target = $region5
    $region4: #{customized_layer.1} parent=1 // pred_region
      %s12 = ssub.s32 512, 512
      %13 = vsyncadd [#allocation3], %s12
      %s14 = sshll.u32 [#allocation2], 4
      %s15 = int_to_ptr.vmem [resolvable:$true] %s14
      %20 = dma.hbm_to_vmem [thread:$0]  %s0, 512, %s15, [#allocation3], 256, 256, 16
    $region5: #{customized_layer.1} parent=1 // pred_fallthru
      _
    // Predicated region
    $region6: #{customized_layer.1} parent=1 // pred_check
      _
    $region7: #{customized_layer.1} parent=1 // pred_check_branch
      %22 = sbr.rel (0) target = $region9
    $region8: #{customized_layer.1} parent=1 // pred_region
      _
    $region9: #{customized_layer.1} parent=1 // pred_fallthru
      _
    // Predicated region
    $region10: #{customized_layer.1} parent=1 // pred_check
      _
    $region11: #{customized_layer.1} parent=1 // pred_check_branch
      %24 = sbr.rel (0) target = $region13
    $region12: #{customized_layer.1} parent=1 // pred_region
      %25 = dma.done [#allocation3], 512
    $region13: #{customized_layer.1} parent=1 // pred_fallthru
      _
    %v26 = vld [vmem:[#allocation2] sm:$0xff]
    %v27 = vld [vmem:[#allocation2 + $0x8] sm:$0xff]
    %v28 = vld [vmem:[#allocation2 + $0x10] sm:$0xff]
    %v29 = vld [vmem:[#allocation2 + $0x18] sm:$0xff]
    %v30 = vmul.f32 %v26, %v26
    %v31 = vmul.f32 %v27, %v27
    %v32 = vmul.f32 %v28, %v28
    %v33 = vmul.f32 %v29, %v29
    %v34 = vadd.f32 %v30, %v31
    %35 = vadd.xlane.f32.xlu0 %v34
    %v36 = vpop.xlane.xlu0 %35
    %v37 = vadd.f32 %v32, %v33
    %38 = vadd.xlane.f32.xlu0 %v37
    %v39 = vpop.xlane.xlu0 %38
    %v40 = vrsqrt.pop %v36
    %v41 = vrsqrt.pop %v39
    %v42 = vld [vmem:[%s1] ss:$2 sm:$0x3]
    %s43 = scalar_lea.vmem %s1, 1
    %v44 = vld [vmem:[%s43] ss:$2 sm:$0x3]
    %v45 = vmul.f32 %v26, %v40
    %v46 = vmul.f32 %v27, %v40
    %v47 = vmul.f32 %v28, %v41
    %v48 = vmul.f32 %v29, %v41
    %v50 = vlaneseq
    %v51 = vshrl.u32 %v50, 7
    %v52 = vsub.s32 0, %v51
    %v53 = vrot.slane %v42, %v52
    %v54 = vlaneseq
    %v55 = vshrl.u32 %v54, 7
    %v56 = vsub.s32 1, %v55
    %v57 = vrot.slane %v42, %v56
    %v60 = vmul.f32 %v45, %v53
    %v61 = vmul.f32 %v46, %v57
    %v62 = vmul.f32 %v47, %v53
    %v63 = vmul.f32 %v48, %v57
    %v65 = vlaneseq
    %v66 = vshrl.u32 %v65, 7
    %v67 = vsub.s32 0, %v66
    %v68 = vrot.slane %v44, %v67
    %v69 = vlaneseq
    %v70 = vshrl.u32 %v69, 7
    %v71 = vsub.s32 1, %v70
    %v72 = vrot.slane %v44, %v71
    %v75 = vadd.f32 %v60, %v68
    %v76 = vadd.f32 %v61, %v72
    %v77 = vadd.f32 %v62, %v68
    %v78 = vadd.f32 %v63, %v72
    %79 = vst [vmem:[#allocation5] sm:$0xff] %v75
    %80 = vst [vmem:[#allocation5 + $0x8] sm:$0xff] %v76
    %81 = vst [vmem:[#allocation5 + $0x10] sm:$0xff] %v77
    %82 = vst [vmem:[#allocation5 + $0x18] sm:$0xff] %v78
    // Predicated region
    $region14: #{customized_layer.1} parent=1 // pred_check
      _
    $region15: #{customized_layer.1} parent=1 // pred_check_branch
      %84 = sbr.rel (0) target = $region17
    $region16: #{customized_layer.1} parent=1 // pred_region
      %s86 = ssub.s32 512, 512
      %87 = vsyncadd [#allocation4], %s86
      %s88 = sshll.u32 [#allocation5], 4
      %s89 = int_to_ptr.vmem [resolvable:$true] %s88
      %94 = dma.vmem_to_hbm [thread:$0]  %s89, 512, %s2, [#allocation4], 256, 256, 16
    $region17: #{customized_layer.1} parent=1 // pred_fallthru
      _
    // Predicated region
    $region18: #{customized_layer.1} parent=1 // pred_check
      _
    $region19: #{customized_layer.1} parent=1 // pred_check_branch
      %96 = sbr.rel (0) target = $region21
    $region20: #{customized_layer.1} parent=1 // pred_region
      %97 = dma.done [#allocation4], 512
    $region21: #{customized_layer.1} parent=1 // pred_fallthru
      _
    %98 = vsyncpa [#allocation3], 1
    %99 = vsyncpa [#allocation4], 1

</llo_original>
